<compile_context>
chip_gen: v7x
topology: tpu7x:2x2x1
jax: 0.10.0
libtpu: 0.0.40
codegen_flags: <defaults>
</compile_context>

<pallas_src>
import jax
import jax.numpy as jnp
from jax import lax
from jax.experimental import pallas as pl
from jax.experimental.pallas import tpu as pltpu


def _round_up(a, m):
    return (a + m - 1) // m * m


def _memory_block_kernel(x_ref, mn_ref, stdt_ref, out_ref, score_ref):
    # x_ref:     (1, c, t)   channels-first tile of pixels
    # mn_ref:    (k, c)      pre-normalized noise_feature (loop-invariant)
    # stdt_ref:  (v, k)      std transposed (loop-invariant)
    # out_ref:   (1, v, t)
    # score_ref: (1, k, t)
    x = x_ref[0].astype(jnp.float32)          # (c, t)
    mn = mn_ref[...]                          # (k, c)
    std_t = stdt_ref[...]                     # (v, k)

    # Deferred input normalization:
    #   score = (mn @ x) / max(||x||, eps)  ==  (mn @ x) * rsqrt(max(||x||^2, eps^2))
    sumsq = jnp.sum(x * x, axis=0, keepdims=True)                    # (1, t)
    inv_norm = lax.rsqrt(jnp.maximum(sumsq, jnp.float32(1e-24)))     # EUP slot

    raw = jnp.dot(mn, x, preferred_element_type=jnp.float32)         # (k, t) MXU
    score = raw * inv_norm                                           # lane-dense

    # softmax over k (the sublane axis; pixels stay on the 128 lanes)
    s_max = jnp.max(score, axis=0, keepdims=True)
    e = jnp.exp(score - s_max)
    denom = jnp.sum(e, axis=0, keepdims=True)
    soft = e * pl.reciprocal(denom, approx=False)   # exact: keep 1e-5 parity

    out = jnp.dot(std_t, soft, preferred_element_type=jnp.float32)   # (v, t) MXU

    out_ref[0] = out.astype(out_ref.dtype)
    score_ref[0] = score.astype(score_ref.dtype)


def memory_block_forward(x_nchw, noise_feature, std, *, tile_hw=2048):
    """x_nchw: (b, c, h, w); noise_feature: (k, c); std: (k, v).

    Returns (out, score) with out: (b, h, w, v), score: (b*h*w, k), matching the
    PyTorch module's eval-time forward.
    """
    b, c, h, w = x_nchw.shape
    k, c2 = noise_feature.shape
    assert c == c2, "channel dim of x must equal k_hdim"
    v = std.shape[1]
    hw = h * w

    # Pixel-axis tile: multiple of 128 lanes, clamped to the (padded) image size.
    tile_hw = max(128, (tile_hw // 128) * 128)
    tile_hw = min(tile_hw, _round_up(hw, 128))
    # Keep at least 2 grid steps so both TensorCores get work on v7x.
    if b == 1 and _round_up(hw, tile_hw) == tile_hw and tile_hw >= 256:
        tile_hw = max(128, (tile_hw // 2) // 128 * 128)
    hw_pad = _round_up(hw, tile_hw)

    # Channels-first view: free reshape, no HBM transpose of x.
    x_cf = x_nchw.reshape(b, c, hw)
    if hw_pad != hw:
        x_cf = jnp.pad(x_cf, ((0, 0), (0, 0), (0, hw_pad - hw)))

    # Loop-invariant table prep, hoisted out of the kernel grid.
    m32 = noise_feature.astype(jnp.float32)
    mn = m32 / jnp.maximum(
        jnp.sqrt(jnp.sum(m32 * m32, axis=1, keepdims=True)), 1e-12)   # (k, c)
    std_t = jnp.transpose(std.astype(jnp.float32))                    # (v, k)

    grid = (b, hw_pad // tile_hw)
    n = b * hw_pad
    cost = pl.CostEstimate(
        flops=2 * n * c * k + 2 * n * k * v + 2 * n * c + 6 * n * k,
        transcendentals=n * k + 2 * n,
        bytes_accessed=4 * (n * c + n * (v + k) + k * c + k * v),
    )

    out_cf, score_cf = pl.pallas_call(
        _memory_block_kernel,
        out_shape=(
            jax.ShapeDtypeStruct((b, v, hw_pad), x_nchw.dtype),
            jax.ShapeDtypeStruct((b, k, hw_pad), jnp.float32),
        ),
        grid_spec=pltpu.PrefetchScalarGridSpec(
            num_scalar_prefetch=0,
            grid=grid,
            in_specs=[
                pl.BlockSpec((1, c, tile_hw), lambda bi, ti: (bi, 0, ti)),
                pl.BlockSpec((k, c), lambda bi, ti: (0, 0)),
                pl.BlockSpec((v, k), lambda bi, ti: (0, 0)),
            ],
            out_specs=[
                pl.BlockSpec((1, v, tile_hw), lambda bi, ti: (bi, 0, ti)),
                pl.BlockSpec((1, k, tile_hw), lambda bi, ti: (bi, 0, ti)),
            ],
        ),
        compiler_params=pltpu.CompilerParams(
            dimension_semantics=("parallel", "parallel")),
        cost_estimate=cost,
    )(x_cf, mn, std_t)

    if hw_pad != hw:
        out_cf = out_cf[:, :, :hw]
        score_cf = score_cf[:, :, :hw]

    # Layout glue back to the PyTorch-facing shapes (outside the hot kernel).
    # Channels-first consumers can use out_cf / score_cf directly and skip this.
    out = jnp.transpose(out_cf, (0, 2, 1)).reshape(b, h, w, v)
    score = jnp.transpose(score_cf, (0, 2, 1)).reshape(b * hw, k)
    return out, score


def _reference(x_nchw, noise_feature, std):
    b, c, h, w = x_nchw.shape
    xf = jnp.transpose(x_nchw, (0, 2, 3, 1)).reshape(-1, c).astype(jnp.float32)
    m = noise_feature.astype(jnp.float32)
    xn = xf / jnp.maximum(jnp.linalg.norm(xf, axis=1, keepdims=True), 1e-12)
    mn = m / jnp.maximum(jnp.linalg.norm(m, axis=1, keepdims=True), 1e-12)
    score = xn @ mn.T
    soft = jax.nn.softmax(score, axis=1)
    out = soft @ std.astype(jnp.float32)
    return out.reshape(b, h, w, std.shape[1]), score


if __name__ == "__main__":
    # module hyperparameters
    k_hdim = 16            # channel dim of x / noise_feature
    v_hdim = 32            # output value dim
    nums_noise_mode = 8    # number of memory slots

    # small input consistent with forward: (b, c, h, w), c == k_hdim
    b, h, w = 2, 16, 16
    key = jax.random.PRNGKey(0)
    kx, km, ks = jax.random.split(key, 3)
    x = jax.random.normal(kx, (b, k_hdim, h, w), dtype=jnp.float32)

    # deterministic parameter init (synthetic; no checkpoint load)
    noise_feature = jax.random.normal(km, (nums_noise_mode, k_hdim), dtype=jnp.float32)
    std = jax.random.normal(ks, (nums_noise_mode, v_hdim), dtype=jnp.float32)

    out, score = memory_block_forward(x, noise_feature, std)
    out = jax.block_until_ready(out)
    score = jax.block_until_ready(score)

    out_ref, score_ref = _reference(x, noise_feature, std)
    assert jnp.allclose(out, out_ref, atol=1e-5, rtol=1e-5)
    assert jnp.allclose(score, score_ref, atol=1e-5, rtol=1e-5)

    # TODO(synk): the EMA `update()` path (training-time codebook update) is not
    # implemented; forward here matches eval / update_flag=False semantics.
    print("KERNEL_OK")
</pallas_src>

<mosaic_0001>
module attributes {stable_mosaic.version = 11 : i64} {
  func.func @_memory_block_kernel(%arg0: i32, %arg1: i32, %arg2: memref<1x16x256xf32, #tpu.memory_space<vmem>>, %arg3: memref<8x16xf32, #tpu.memory_space<vmem>>, %arg4: memref<32x8xf32, #tpu.memory_space<vmem>>, %arg5: memref<1x32x256xf32, #tpu.memory_space<vmem>>, %arg6: memref<1x8x256xf32, #tpu.memory_space<vmem>>) attributes {dimension_semantics = [#tpu.dimension_semantics<parallel>, #tpu.dimension_semantics<parallel>], iteration_bounds = array<i64: 2, 1>, scalar_prefetch = 0 : i64, scratch_operands = 0 : i64, tpu.core_type = #tpu.core_type<tc>, window_params = [{transform_indices = @transform_0, window_bounds = array<i64: 1, 16, 256>}, {pipeline_mode = #tpu.pipeline_mode<synchronous>, transform_indices = @transform_1, window_bounds = array<i64: 8, 16>}, {pipeline_mode = #tpu.pipeline_mode<synchronous>, transform_indices = @transform_2, window_bounds = array<i64: 32, 8>}, {transform_indices = @transform_3, window_bounds = array<i64: 1, 32, 256>}, {transform_indices = @transform_4, window_bounds = array<i64: 1, 8, 256>}]} {
    %c0 = arith.constant 0 : index
    %c0_0 = arith.constant 0 : index
    %c0_1 = arith.constant 0 : index
    %0 = vector.load %arg2[%c0, %c0_0, %c0_1] : memref<1x16x256xf32, #tpu.memory_space<vmem>>, vector<1x16x256xf32>
    %1 = vector.shape_cast %0 : vector<1x16x256xf32> to vector<16x256xf32>
    %c0_2 = arith.constant 0 : index
    %c0_3 = arith.constant 0 : index
    %2 = vector.load %arg3[%c0_2, %c0_3] : memref<8x16xf32, #tpu.memory_space<vmem>>, vector<8x16xf32>
    %c0_4 = arith.constant 0 : index
    %c0_5 = arith.constant 0 : index
    %3 = vector.load %arg4[%c0_4, %c0_5] : memref<32x8xf32, #tpu.memory_space<vmem>>, vector<32x8xf32>
    %4 = arith.mulf %1, %1 : vector<16x256xf32>
    %cst = arith.constant dense<0.000000e+00> : vector<256xf32>
    %5 = vector.multi_reduction <add>, %4, %cst [0] : vector<16x256xf32> to vector<256xf32>
    %6 = vector.shape_cast %5 : vector<256xf32> to vector<1x256xf32>
    %cst_6 = arith.constant 1.000000e-24 : f32
    %7 = vector.broadcast %cst_6 : f32 to vector<1x256xf32>
    %8 = arith.maximumf %6, %7 : vector<1x256xf32>
    %9 = math.rsqrt %8 : vector<1x256xf32>
    %cst_7 = arith.constant dense<0.000000e+00> : vector<8x256xf32>
    %10 = tpu.matmul %2, %1, %cst_7 {dimension_numbers = #tpu.dot_dimension_numbers<[1], [0], [0], [1], [0, 0, 1, 1], [], []>} : vector<8x16xf32>, vector<16x256xf32>, vector<8x256xf32> -> vector<8x256xf32>
    %11 = vector.broadcast %9 : vector<1x256xf32> to vector<8x256xf32>
    %12 = arith.mulf %10, %11 : vector<8x256xf32>
    %cst_8 = arith.constant dense<0xFF800000> : vector<256xf32>
    %13 = vector.multi_reduction <maximumf>, %12, %cst_8 [0] : vector<8x256xf32> to vector<256xf32>
    %14 = vector.shape_cast %13 : vector<256xf32> to vector<1x256xf32>
    %15 = vector.broadcast %14 : vector<1x256xf32> to vector<8x256xf32>
    %16 = arith.subf %12, %15 : vector<8x256xf32>
    %17 = math.exp %16 : vector<8x256xf32>
    %cst_9 = arith.constant dense<0.000000e+00> : vector<256xf32>
    %18 = vector.multi_reduction <add>, %17, %cst_9 [0] : vector<8x256xf32> to vector<256xf32>
    %19 = vector.shape_cast %18 : vector<256xf32> to vector<1x256xf32>
    %20 = tpu.reciprocal %19 : vector<1x256xf32> -> vector<1x256xf32>
    %21 = vector.broadcast %20 : vector<1x256xf32> to vector<8x256xf32>
    %22 = arith.mulf %17, %21 : vector<8x256xf32>
    %cst_10 = arith.constant dense<0.000000e+00> : vector<32x256xf32>
    %23 = tpu.matmul %3, %22, %cst_10 {dimension_numbers = #tpu.dot_dimension_numbers<[1], [0], [0], [1], [0, 0, 1, 1], [], []>} : vector<32x8xf32>, vector<8x256xf32>, vector<32x256xf32> -> vector<32x256xf32>
    %c0_11 = arith.constant 0 : index
    %c0_12 = arith.constant 0 : index
    %c0_13 = arith.constant 0 : index
    %24 = vector.load %arg5[%c0_11, %c0_12, %c0_13] : memref<1x32x256xf32, #tpu.memory_space<vmem>>, vector<1x32x256xf32>
    %25 = vector.shape_cast %24 : vector<1x32x256xf32> to vector<32x256xf32>
    %26 = vector.shape_cast %23 : vector<32x256xf32> to vector<1x32x256xf32>
    tpu.vector_store %arg5[%c0_11, %c0_12, %c0_13], %26 {strides = array<i32>} : memref<1x32x256xf32, #tpu.memory_space<vmem>>, vector<1x32x256xf32>,
    %c0_14 = arith.constant 0 : index
    %c0_15 = arith.constant 0 : index
    %c0_16 = arith.constant 0 : index
    %27 = vector.load %arg6[%c0_14, %c0_15, %c0_16] : memref<1x8x256xf32, #tpu.memory_space<vmem>>, vector<1x8x256xf32>
    %28 = vector.shape_cast %27 : vector<1x8x256xf32> to vector<8x256xf32>
    %29 = vector.shape_cast %12 : vector<8x256xf32> to vector<1x8x256xf32>
    tpu.vector_store %arg6[%c0_14, %c0_15, %c0_16], %29 {strides = array<i32>} : memref<1x8x256xf32, #tpu.memory_space<vmem>>, vector<1x8x256xf32>,
    return
  }
  func.func @transform_0(%arg0: i32, %arg1: i32) -> (i32, i32, i32) {
    %c0_i32 = arith.constant 0 : i32
    %c0_i32_0 = arith.constant 0 : i32
    return %arg0, %c0_i32, %arg1 : i32, i32, i32
  }
  func.func @transform_1(%arg0: i32, %arg1: i32) -> (i32, i32) {
    %c0_i32 = arith.constant 0 : i32
    %c0_i32_0 = arith.constant 0 : i32
    %c0_i32_1 = arith.constant 0 : i32
    return %c0_i32, %c0_i32_0 : i32, i32
  }
  func.func @transform_2(%arg0: i32, %arg1: i32) -> (i32, i32) {
    %c0_i32 = arith.constant 0 : i32
    %c0_i32_0 = arith.constant 0 : i32
    %c0_i32_1 = arith.constant 0 : i32
    return %c0_i32, %c0_i32_0 : i32, i32
  }
  func.func @transform_3(%arg0: i32, %arg1: i32) -> (i32, i32, i32) {
    %c0_i32 = arith.constant 0 : i32
    %c0_i32_0 = arith.constant 0 : i32
    return %arg0, %c0_i32, %arg1 : i32, i32, i32
  }
  func.func @transform_4(%arg0: i32, %arg1: i32) -> (i32, i32, i32) {
    %c0_i32 = arith.constant 0 : i32
    %c0_i32_0 = arith.constant 0 : i32
    return %arg0, %c0_i32, %arg1 : i32, i32, i32
  }
}

</mosaic_0001>

<llo_original>
// kernel: tpu_custom_call.1
$region0: #{tpu_custom_call.1}
  #allocation0 [shape = 'u32[]', space=smem, size = 0x4, offset = 0x4, fixed_abs, tag = 'smem constant byte address 0x4 - core index']
  #allocation1 [shape = 'u32[144,128]{1,0:T(1,128)}', space=vmem, size = 0x12000, scoped, tag = 'internal scratch']
  %s0 = inlined_call_operand.hbm [shape: f32[2,16,256], index: 0, kind: input, shape index: {}]
  %s1 = inlined_call_operand.vmem [shape: f32[8,16], index: 1, kind: input, shape index: {}]
  %s2 = inlined_call_operand.vmem [shape: f32[32,8], index: 2, kind: input, shape index: {}]
  %s3 = inlined_call_operand.hbm [shape: f32[2,32,256], index: 3, kind: output, shape index: {0}]
  %s4 = inlined_call_operand.hbm [shape: f32[2,8,256], index: 4, kind: output, shape index: {1}]
  %5 = xla_tuple %s3, %s4
  %s6 = sld [smem:[#allocation0]]
  $region57: #{tpu_custom_call.1} parent=0
    _
  %s8 = ssub.s32 1, %s6
  %s9 = scalar_select 0, %s8, %s6
  $region1: #{tpu_custom_call.1} parent=0
    #allocation2 [shape = 'u8[32768]{0}', space=vmem, size = 0x8000, scoped, tag = 'input window, operand 0']
    #allocation3 [shape = 's32[2]{0}', space=sflag, size = 0x8, scoped, tag = 'scoped memory for tpu_custom_call.1']
    #allocation4 [shape = 's32[2]{0}', space=sflag, size = 0x8, scoped, tag = 'scoped memory for tpu_custom_call.1']
    #allocation5 [shape = 'u8[65536]{0}', space=vmem, size = 0x10000, scoped, tag = 'output window, operand 0']
    #allocation6 [shape = 'u8[16384]{0}', space=vmem, size = 0x4000, scoped, tag = 'output window, operand 1']
    #allocation7 [shape = 's32[2]{0}', space=sflag, size = 0x8, scoped, tag = 'scoped memory for tpu_custom_call.1']
    %10 = vsyncpa [#allocation3], 0
    %s11 = scalar_lea.sflag [#allocation3], 1
    %12 = vsyncpa %s11, 0
    %13 = vsyncpa [#allocation4], 0
    %s14 = scalar_lea.sflag [#allocation4], 1
    %15 = vsyncpa %s14, 0
    %16 = vsyncpa [#allocation7], 0
    %s17 = scalar_lea.sflag [#allocation7], 1
    %18 = vsyncpa %s17, 0
    loop: start=0, step=1, limit=4
    $region2: #{tpu_custom_call.1} parent=1 // loop_pre_header
      _
    $region3: #{tpu_custom_call.1} parent=1 // loop_header
      %s20 = sphi 0, %s24
      %p21 = scmp.ge.s32.totalorder %s20, 4
      %s27 = sphi 0, %s39
      %s28 = sphi 0, %s35
      %s29 = sphi 0, %s27
      %s30 = sphi 0, %s28
      %s31 = sphi 0, %s29
      %s32 = sphi 0, %s30
      %s44 = sphi 0, %s46
      %s47 = sphi 0, %s44
      %s48 = sphi 0, %s47
      %s64 = sphi 0, %s48
      %s68 = sphi 0, %s68
      %s70 = sphi 0, %s68
      %s71 = sphi 0, %s70
      %s85 = sphi 0, %s71
      %s89 = sphi 0, %s89
      %s91 = sphi 0, %s89
      %s92 = sphi 0, %s91
      %s106 = sphi 0, %s92
      %s114 = sphi 0, %s116
      %s117 = sphi 0, %s114
      %s118 = sphi 0, %s117
      %s134 = sphi 0, %s118
      %s142 = sphi 0, %s144
      %s145 = sphi 0, %s142
      %s146 = sphi 0, %s145
      %s162 = sphi 0, %s146
    $region4: #{tpu_custom_call.1} parent=1 // loop_header_branch
      %23 = sbr.rel (%p21) target = $region8
    $region5: #{tpu_custom_call.1} parent=1 // loop_body
      %s25 = ssub.s32 %s20, 1
      %s26 = ssub.s32 %s20, 2
      %s33 = sadd.s32 1, %s28
      %p34 = scmp.ge.s32.totalorder %s33, 1
      %s35 = scalar_select %p34, 0, %s33
      %s36 = sadd.s32 1, %s27
      %s37 = scalar_select %p34, %s36, %s27
      %p38 = scmp.ge.s32.totalorder %s37, 2
      %s39 = scalar_select %p38, 0, %s37
      %s40 = ssub.s32 %s27, %s39
      %s41 = ssub.s32 %s28, %s35
      %s42 = sor.u32 %s40, %s41
      %p43 = scmp.eq.s32.totalorder %s42, 0
      %s45 = sadd.s32 %s44, 1
      %s46 = scalar_select %p43, %s44, %s45
      %p49 = pneg %p43
      %p50 = scmp.eq.s32.totalorder %s20, 1
      %p51 = por %p49, %p50
      %p52 = scmp.ne.s32.totalorder %s44, %s47
      %p53 = scmp.eq.s32.totalorder %s20, 0
      %p54 = por %p52, %p53
      %p55 = scmp.ne.s32.totalorder %s44, %s47
      %p56 = scmp.eq.s32.totalorder %s25, 1
      %p57 = por %p55, %p56
      %p58 = scmp.ne.s32.totalorder %s47, %s48
      %p59 = scmp.eq.s32.totalorder %s25, 0
      %p60 = por %p58, %p59
      %p61 = scmp.ne.s32.totalorder %s47, %s48
      %p62 = scmp.eq.s32.totalorder %s26, 1
      %p63 = por %p61, %p62
      %p65 = scmp.ne.s32.totalorder %s48, %s64
      %p66 = scmp.eq.s32.totalorder %s26, 0
      %p67 = por %p65, %p66
      %s69 = sadd.s32 %s68, 1
      %p72 = scmp.eq.s32.totalorder %s20, 1
      %p73 = scmp.ne.s32.totalorder %s68, %s70
      %p74 = scmp.eq.s32.totalorder %s20, 0
      %p75 = por %p73, %p74
      %p76 = scmp.ne.s32.totalorder %s68, %s70
      %p77 = scmp.eq.s32.totalorder %s25, 1
      %p78 = por %p76, %p77
      %p79 = scmp.ne.s32.totalorder %s70, %s71
      %p80 = scmp.eq.s32.totalorder %s25, 0
      %p81 = por %p79, %p80
      %p82 = scmp.ne.s32.totalorder %s70, %s71
      %p83 = scmp.eq.s32.totalorder %s26, 1
      %p84 = por %p82, %p83
      %p86 = scmp.ne.s32.totalorder %s71, %s85
      %p87 = scmp.eq.s32.totalorder %s26, 0
      %p88 = por %p86, %p87
      %s90 = sadd.s32 %s89, 1
      %p93 = scmp.eq.s32.totalorder %s20, 1
      %p94 = scmp.ne.s32.totalorder %s89, %s91
      %p95 = scmp.eq.s32.totalorder %s20, 0
      %p96 = por %p94, %p95
      %p97 = scmp.ne.s32.totalorder %s89, %s91
      %p98 = scmp.eq.s32.totalorder %s25, 1
      %p99 = por %p97, %p98
      %p100 = scmp.ne.s32.totalorder %s91, %s92
      %p101 = scmp.eq.s32.totalorder %s25, 0
      %p102 = por %p100, %p101
      %p103 = scmp.ne.s32.totalorder %s91, %s92
      %p104 = scmp.eq.s32.totalorder %s26, 1
      %p105 = por %p103, %p104
      %p107 = scmp.ne.s32.totalorder %s92, %s106
      %p108 = scmp.eq.s32.totalorder %s26, 0
      %p109 = por %p107, %p108
      %s110 = ssub.s32 %s27, %s39
      %s111 = ssub.s32 %s28, %s35
      %s112 = sor.u32 %s110, %s111
      %p113 = scmp.eq.s32.totalorder %s112, 0
      %s115 = sadd.s32 %s114, 1
      %s116 = scalar_select %p113, %s114, %s115
      %p119 = pneg %p113
      %p120 = scmp.eq.s32.totalorder %s20, 1
      %p121 = por %p119, %p120
      %p122 = scmp.ne.s32.totalorder %s114, %s117
      %p123 = scmp.eq.s32.totalorder %s20, 0
      %p124 = por %p122, %p123
      %p125 = scmp.ne.s32.totalorder %s114, %s117
      %p126 = scmp.eq.s32.totalorder %s25, 1
      %p127 = por %p125, %p126
      %p128 = scmp.ne.s32.totalorder %s117, %s118
      %p129 = scmp.eq.s32.totalorder %s25, 0
      %p130 = por %p128, %p129
      %p131 = scmp.ne.s32.totalorder %s117, %s118
      %p132 = scmp.eq.s32.totalorder %s26, 1
      %p133 = por %p131, %p132
      %p135 = scmp.ne.s32.totalorder %s118, %s134
      %p136 = scmp.eq.s32.totalorder %s26, 0
      %p137 = por %p135, %p136
      %s138 = ssub.s32 %s27, %s39
      %s139 = ssub.s32 %s28, %s35
      %s140 = sor.u32 %s138, %s139
      %p141 = scmp.eq.s32.totalorder %s140, 0
      %s143 = sadd.s32 %s142, 1
      %s144 = scalar_select %p141, %s142, %s143
      %p147 = pneg %p141
      %p148 = scmp.eq.s32.totalorder %s20, 1
      %p149 = por %p147, %p148
      %p150 = scmp.ne.s32.totalorder %s142, %s145
      %p151 = scmp.eq.s32.totalorder %s20, 0
      %p152 = por %p150, %p151
      %p153 = scmp.ne.s32.totalorder %s142, %s145
      %p154 = scmp.eq.s32.totalorder %s25, 1
      %p155 = por %p153, %p154
      %p156 = scmp.ne.s32.totalorder %s145, %s146
      %p157 = scmp.eq.s32.totalorder %s25, 0
      %p158 = por %p156, %p157
      %p159 = scmp.ne.s32.totalorder %s145, %s146
      %p160 = scmp.eq.s32.totalorder %s26, 1
      %p161 = por %p159, %p160
      %p163 = scmp.ne.s32.totalorder %s146, %s162
      %p164 = scmp.eq.s32.totalorder %s26, 0
      %p165 = por %p163, %p164
      %p166 = scmp.le.s32.totalorder 1, %s20
      %p167 = scmp.lt.s32.totalorder %s20, 3
      %p168 = pnand %p166, %p167
      %p169 = pneg %p168
      // Predicated region
      $region9: #{tpu_custom_call.1} parent=5 // pred_check
        _
      $region10: #{tpu_custom_call.1} parent=5 // pred_check_branch
        %171 = sbr.rel (%p168) target = $region12
      $region11: #{tpu_custom_call.1} parent=5 // pred_region
        %s172 = ssub.s32 %s20, 1
        // Predicated region
        $region13: #{tpu_custom_call.1} parent=11 // pred_check
          %p173 = pneg %p81
        $region14: #{tpu_custom_call.1} parent=11 // pred_check_branch
          %175 = sbr.rel (%p173) target = $region16
        $region15: #{tpu_custom_call.1} parent=11 // pred_region
          _
        $region16: #{tpu_custom_call.1} parent=11 // pred_fallthru
          _
        // Predicated region
        $region17: #{tpu_custom_call.1} parent=11 // pred_check
          %p176 = pneg %p102
        $region18: #{tpu_custom_call.1} parent=11 // pred_check_branch
          %178 = sbr.rel (%p176) target = $region20
        $region19: #{tpu_custom_call.1} parent=11 // pred_region
          _
        $region20: #{tpu_custom_call.1} parent=11 // pred_fallthru
          _
      $region12: #{tpu_custom_call.1} parent=5 // pred_fallthru
        _
      %p179 = scmp.lt.s32.totalorder %s20, 2
      // Predicated region
      $region21: #{tpu_custom_call.1} parent=5 // pred_check
        %p180 = pneg %p179
      $region22: #{tpu_custom_call.1} parent=5 // pred_check_branch
        %182 = sbr.rel (%p180) target = $region24
      $region23: #{tpu_custom_call.1} parent=5 // pred_region
        // Predicated region
        $region25: #{tpu_custom_call.1} parent=23 // pred_check
          %p183 = pneg %p54
        $region26: #{tpu_custom_call.1} parent=23 // pred_check_branch
          %185 = sbr.rel (%p183) target = $region28
        $region27: #{tpu_custom_call.1} parent=23 // pred_region
          %s186 = sand.u32 %s44, 1
          %s187 = scalar_lea.sflag [#allocation3], %s186
          %s188 = sand.u32 %s44, 1
          %s189 = smul.addr %s188, 32
          %s190 = scalar_lea.vmem [#allocation2], %s189
          %s191 = smul.u32 2, %s28
          %s193 = ssub.s32 512, 512
          %194 = vsyncadd %s187, %s193
          %s195 = smul.addr %s27, 4
          %s196 = sadd.s32 %s191, %s195
          %s197 = smul.addr %s196, 128
          %s198 = scalar_lea.hbm %s0, %s197
          %s199 = sshll.u32 %s190, 4
          %s200 = int_to_ptr.vmem [resolvable:$true] %s199
          %205 = dma.hbm_to_vmem [thread:$0]  %s198, 512, %s200, %s187, 256, 256, 16
        $region28: #{tpu_custom_call.1} parent=23 // pred_fallthru
          _
      $region24: #{tpu_custom_call.1} parent=5 // pred_fallthru
        _
      %p206 = scmp.le.s32.totalorder 1, %s20
      %p207 = scmp.lt.s32.totalorder %s20, 3
      %p208 = pnand %p206, %p207
      %p209 = pneg %p208
      // Predicated region
      $region29: #{tpu_custom_call.1} parent=5 // pred_check
        _
      $region30: #{tpu_custom_call.1} parent=5 // pred_check_branch
        %211 = sbr.rel (%p208) target = $region32
      $region31: #{tpu_custom_call.1} parent=5 // pred_region
        %s212 = ssub.s32 %s20, 1
        %s213 = sand.u32 %s47, 1
        %s214 = scalar_lea.sflag [#allocation3], %s213
        %s215 = sand.u32 %s47, 1
        %s216 = smul.addr %s215, 32
        %s217 = scalar_lea.vmem [#allocation2], %s216
        // Predicated region
        $region33: #{tpu_custom_call.1} parent=31 // pred_check
          %p218 = pneg %p60
        $region34: #{tpu_custom_call.1} parent=31 // pred_check_branch
          %220 = sbr.rel (%p218) target = $region36
        $region35: #{tpu_custom_call.1} parent=31 // pred_region
          %221 = dma.done %s214, 512
        $region36: #{tpu_custom_call.1} parent=31 // pred_fallthru
          _
        %s222 = sand.u32 %s47, 1
        %s223 = scalar_lea.sflag [#allocation3], %s222
        %s224 = sand.u32 %s47, 1
        %s225 = smul.addr %s224, 32
        %s226 = scalar_lea.vmem [#allocation2], %s225
        %p227 = pneg %p60
        %p228 = pneg %p57
        %p229 = pneg %p81
        %p230 = pneg %p78
        %p231 = pneg %p102
        %p232 = pneg %p99
        %p233 = pneg %p130
        %p234 = pneg %p127
        %s235 = sand.u32 %s117, 1
        %s236 = scalar_lea.sflag [#allocation4], %s235
        %s237 = sand.u32 %s117, 1
        %s238 = smul.addr %s237, 64
        %s239 = scalar_lea.vmem [#allocation5], %s238
        %p240 = pneg %p158
        %p241 = pneg %p155
        %s242 = sand.u32 %s145, 1
        %s243 = scalar_lea.sflag [#allocation7], %s242
        %s244 = sand.u32 %s145, 1
        %s245 = smul.addr %s244, 16
        %s246 = scalar_lea.vmem [#allocation6], %s245
        %s247 = smul.u32 2, %s30
        %s248 = smul.u32 2, %s30
        %s249 = smul.u32 2, %s30
        %v250 = vld [vmem:[%s217] sm:$0xff]
        %v251 = vld [vmem:[%s217 + $0x8] sm:$0xff]
        %v252 = vld [vmem:[%s217 + $0x10] sm:$0xff]
        %v253 = vld [vmem:[%s217 + $0x18] sm:$0xff]
        %v254 = vld [vmem:[%s1] sm:$0xff]
        %v255 = vld [vmem:[%s2] sm:$0xff]
        %v256 = vld [vmem:[%s2 + $0x8] sm:$0xff]
        %v257 = vld [vmem:[%s2 + $0x10] sm:$0xff]
        %v258 = vld [vmem:[%s2 + $0x18] sm:$0xff]
        %v259 = vmul.f32 %v250, %v250
        %v260 = vmul.f32 %v251, %v251
        %v261 = vmul.f32 %v252, %v252
        %v262 = vmul.f32 %v253, %v253
        %v263 = vadd.f32 %v259, %v261
        %v264 = vrot.slane %v263, 4
        %v265 = vadd.f32 %v263, %v264
        %v266 = vrot.slane %v265, 2
        %v267 = vadd.f32 %v265, %v266
        %v268 = vrot.slane %v267, 1
        %v269 = vadd.f32 %v267, %v268
        %v270 = vadd.f32 %v260, %v262
        %v271 = vrot.slane %v270, 4
        %v272 = vadd.f32 %v270, %v271
        %v273 = vrot.slane %v272, 2
        %v274 = vadd.f32 %v272, %v273
        %v275 = vrot.slane %v274, 1
        %v276 = vadd.f32 %v274, %v275
        %v277 = vmax.f32 %v269, 1e-24
        %v278 = vmax.f32 %v276, 1e-24
        %v279 = vrsqrt.pop %v277
        %v280 = vrsqrt.pop %v278
        %vm281 = vcmask 130048
        %v283 = vsel %vm281, %v254, 0
        %285 = vmatprep.subr.mxu0 %v251
        %286 = vmatpush1.msra.mxu0 %v250
        %287 = vmatprep.subr.mxu0 %v253
        %288 = vmatpush1.msra.mxu0 %v252
        %289 = vmatprep.subr.mxu0 0.0
        %290 = vmatpush1.msra.mxu0 0.0
        %291 = vmatprep.subr.mxu0 0.0
        %292 = vmatpush1.msra.mxu0 0.0
        %293 = vmatprep.subr.mxu0 0.0
        %294 = vmatpush1.msra.mxu0 0.0
        %295 = vmatprep.subr.mxu0 0.0
        %296 = vmatpush1.msra.mxu0 0.0
        %297 = vmatprep.subr.mxu0 0.0
        %298 = vmatpush1.msra.mxu0 0.0
        %299 = vmatprep.subr.mxu0 0.0
        %300 = vmatpush1.msra.mxu0 0.0
        %301 = vmatprep.subr.mxu0 0.0
        %302 = vmatpush1.msra.mxu0 0.0
        %303 = vmatprep.subr.mxu0 0.0
        %304 = vmatpush1.msra.mxu0 0.0
        %305 = vmatprep.subr.mxu0 0.0
        %306 = vmatpush1.msra.mxu0 0.0
        %307 = vmatprep.subr.mxu0 0.0
        %308 = vmatpush1.msra.mxu0 0.0
        %309 = vmatprep.subr.mxu0 0.0
        %310 = vmatpush1.msra.mxu0 0.0
        %311 = vmatprep.subr.mxu0 0.0
        %312 = vmatpush1.msra.mxu0 0.0
        %313 = vmatprep.subr.mxu0 0.0
        %314 = vmatpush1.msra.mxu0 0.0
        %315 = vmatprep.subr.mxu0 0.0
        %316 = vmatpush1.msra.mxu0 0.0
        %317 = vmatprep.subr.mxu0 0.0
        %318 = vmatpush1.msra.mxu0 0.0
        %319 = vmatprep.subr.mxu0 0.0
        %320 = vmatpush1.msra.mxu0 0.0
        %321 = vmatprep.subr.mxu0 0.0
        %322 = vmatpush1.msra.mxu0 0.0
        %323 = vmatprep.subr.mxu0 0.0
        %324 = vmatpush1.msra.mxu0 0.0
        %325 = vmatprep.subr.mxu0 0.0
        %326 = vmatpush1.msra.mxu0 0.0
        %327 = vmatprep.subr.mxu0 0.0
        %328 = vmatpush1.msra.mxu0 0.0
        %329 = vmatprep.subr.mxu0 0.0
        %330 = vmatpush1.msra.mxu0 0.0
        %331 = vmatprep.subr.mxu0 0.0
        %332 = vmatpush1.msra.mxu0 0.0
        %333 = vmatprep.subr.mxu0 0.0
        %334 = vmatpush1.msra.mxu0 0.0
        %335 = vmatprep.subr.mxu0 0.0
        %336 = vmatpush1.msra.mxu0 0.0
        %337 = vmatprep.subr.mxu0 0.0
        %338 = vmatpush1.msra.mxu0 0.0
        %339 = vmatprep.subr.mxu0 0.0
        %340 = vmatpush1.msra.mxu0 0.0
        %341 = vmatprep.subr.mxu0 0.0
        %342 = vmatpush1.msra.mxu0 0.0
        %343 = vmatprep.subr.mxu0 0.0
        %344 = vmatpush1.msra.mxu0 0.0
        %345 = vmatprep.subr.mxu0 0.0
        %346 = vmatpush1.msra.mxu0 0.0
        %347 = vmatprep.subr.mxu0 0.0
        %348 = vmatpush1.msra.mxu0 0.0
        %349 = vmatprep.mubr.f32.mxu0 0.0
        %350 = vmatmul.mubr.f32.gmra.mrb[0].mxu0 %v283
        %v351 = vpop.f32.mrb[0].mxu0
        %v352 = vadd.f32 0.0, %v351
        %v353 = vpop.f32.mrb[0].mxu0
        %v354 = vadd.f32 0.0, %v353
        %355 = vdwg.mxu0
        %v356 = vmul.f32 %v352, %v279
        %v357 = vmul.f32 %v354, %v280
        %v358 = vrot.slane %v356, 4
        %v359 = vmax.f32 %v356, %v358
        %v360 = vrot.slane %v359, 2
        %v361 = vmax.f32 %v359, %v360
        %v362 = vrot.slane %v361, 1
        %v363 = vmax.f32 %v361, %v362
        %v364 = vrot.slane %v357, 4
        %v365 = vmax.f32 %v357, %v364
        %v366 = vrot.slane %v365, 2
        %v367 = vmax.f32 %v365, %v366
        %v368 = vrot.slane %v367, 1
        %v369 = vmax.f32 %v367, %v368
        %v370 = vsub.f32 %v356, %v363
        %v371 = vsub.f32 %v357, %v369
        %v372 = vmul.f32 %v370, 1.442695
        %v373 = vpow.pop %v372
        %v374 = vmul.f32 %v371, 1.442695
        %v375 = vpow.pop %v374
        %v376 = vrot.slane %v373, 4
        %v377 = vadd.f32 %v373, %v376
        %v378 = vrot.slane %v377, 2
        %v379 = vadd.f32 %v377, %v378
        %v380 = vrot.slane %v379, 1
        %v381 = vadd.f32 %v379, %v380
        %v382 = vrot.slane %v375, 4
        %v383 = vadd.f32 %v375, %v382
        %v384 = vrot.slane %v383, 2
        %v385 = vadd.f32 %v383, %v384
        %v386 = vrot.slane %v385, 1
        %v387 = vadd.f32 %v385, %v386
        %v388 = vrcp.pop %v381
        %v389 = vrcp.pop %v387
        %v390 = vmul.f32 %v373, %v388
        %v391 = vmul.f32 %v375, %v389
        %vm392 = vcmask 64512
        %v394 = vsel %vm392, %v255, 0
        %v397 = vsel %vm392, %v256, 0
        %v400 = vsel %vm392, %v257, 0
        %v403 = vsel %vm392, %v258, 0
        %405 = vmatprep.subr.mxu0 %v391
        %406 = vmatpush1.msra.mxu0 %v390
        %407 = vmatprep.subr.mxu0 0.0
        %408 = vmatpush1.msra.mxu0 0.0
        %409 = vmatprep.subr.mxu0 0.0
        %410 = vmatpush1.msra.mxu0 0.0
        %411 = vmatprep.subr.mxu0 0.0
        %412 = vmatpush1.msra.mxu0 0.0
        %413 = vmatprep.subr.mxu0 0.0
        %414 = vmatpush1.msra.mxu0 0.0
        %415 = vmatprep.subr.mxu0 0.0
        %416 = vmatpush1.msra.mxu0 0.0
        %417 = vmatprep.subr.mxu0 0.0
        %418 = vmatpush1.msra.mxu0 0.0
        %419 = vmatprep.subr.mxu0 0.0
        %420 = vmatpush1.msra.mxu0 0.0
        %421 = vmatprep.subr.mxu0 0.0
        %422 = vmatpush1.msra.mxu0 0.0
        %423 = vmatprep.subr.mxu0 0.0
        %424 = vmatpush1.msra.mxu0 0.0
        %425 = vmatprep.subr.mxu0 0.0
        %426 = vmatpush1.msra.mxu0 0.0
        %427 = vmatprep.subr.mxu0 0.0
        %428 = vmatpush1.msra.mxu0 0.0
        %429 = vmatprep.subr.mxu0 0.0
        %430 = vmatpush1.msra.mxu0 0.0
        %431 = vmatprep.subr.mxu0 0.0
        %432 = vmatpush1.msra.mxu0 0.0
        %433 = vmatprep.subr.mxu0 0.0
        %434 = vmatpush1.msra.mxu0 0.0
        %435 = vmatprep.subr.mxu0 0.0
        %436 = vmatpush1.msra.mxu0 0.0
        %437 = vmatprep.subr.mxu0 0.0
        %438 = vmatpush1.msra.mxu0 0.0
        %439 = vmatprep.subr.mxu0 0.0
        %440 = vmatpush1.msra.mxu0 0.0
        %441 = vmatprep.subr.mxu0 0.0
        %442 = vmatpush1.msra.mxu0 0.0
        %443 = vmatprep.subr.mxu0 0.0
        %444 = vmatpush1.msra.mxu0 0.0
        %445 = vmatprep.subr.mxu0 0.0
        %446 = vmatpush1.msra.mxu0 0.0
        %447 = vmatprep.subr.mxu0 0.0
        %448 = vmatpush1.msra.mxu0 0.0
        %449 = vmatprep.subr.mxu0 0.0
        %450 = vmatpush1.msra.mxu0 0.0
        %451 = vmatprep.subr.mxu0 0.0
        %452 = vmatpush1.msra.mxu0 0.0
        %453 = vmatprep.subr.mxu0 0.0
        %454 = vmatpush1.msra.mxu0 0.0
        %455 = vmatprep.subr.mxu0 0.0
        %456 = vmatpush1.msra.mxu0 0.0
        %457 = vmatprep.subr.mxu0 0.0
        %458 = vmatpush1.msra.mxu0 0.0
        %459 = vmatprep.subr.mxu0 0.0
        %460 = vmatpush1.msra.mxu0 0.0
        %461 = vmatprep.subr.mxu0 0.0
        %462 = vmatpush1.msra.mxu0 0.0
        %463 = vmatprep.subr.mxu0 0.0
        %464 = vmatpush1.msra.mxu0 0.0
        %465 = vmatprep.subr.mxu0 0.0
        %466 = vmatpush1.msra.mxu0 0.0
        %467 = vmatprep.subr.mxu0 0.0
        %468 = vmatpush1.msra.mxu0 0.0
        %469 = vmatprep.mubr.f32.mxu0 0.0
        %470 = vmatmul.mubr.f32.gmra.mrb[0].mxu0 %v394
        %v471 = vpop.f32.mrb[0].mxu0
        %v472 = vadd.f32 0.0, %v471
        %v473 = vpop.f32.mrb[0].mxu0
        %v474 = vadd.f32 0.0, %v473
        %475 = vmatprep.mubr.f32.mxu0 0.0
        %476 = vmatmul.mubr.f32.gmra.mrb[0].mxu0 %v397
        %v477 = vpop.f32.mrb[0].mxu0
        %v478 = vadd.f32 0.0, %v477
        %v479 = vpop.f32.mrb[0].mxu0
        %v480 = vadd.f32 0.0, %v479
        %481 = vmatprep.mubr.f32.mxu0 0.0
        %482 = vmatmul.mubr.f32.gmra.mrb[0].mxu0 %v400
        %v483 = vpop.f32.mrb[0].mxu0
        %v484 = vadd.f32 0.0, %v483
        %v485 = vpop.f32.mrb[0].mxu0
        %v486 = vadd.f32 0.0, %v485
        %487 = vmatprep.mubr.f32.mxu0 0.0
        %488 = vmatmul.mubr.f32.gmra.mrb[0].mxu0 %v403
        %v489 = vpop.f32.mrb[0].mxu0
        %v490 = vadd.f32 0.0, %v489
        %v491 = vpop.f32.mrb[0].mxu0
        %v492 = vadd.f32 0.0, %v491
        %493 = vdwg.mxu0
        %494 = vst [vmem:[%s239] sm:$0xff] %v472
        %495 = vst [vmem:[%s239 + $0x8] sm:$0xff] %v474
        %496 = vst [vmem:[%s239 + $0x10] sm:$0xff] %v478
        %497 = vst [vmem:[%s239 + $0x18] sm:$0xff] %v480
        %498 = vst [vmem:[%s239 + $0x20] sm:$0xff] %v484
        %499 = vst [vmem:[%s239 + $0x28] sm:$0xff] %v486
        %500 = vst [vmem:[%s239 + $0x30] sm:$0xff] %v490
        %501 = vst [vmem:[%s239 + $0x38] sm:$0xff] %v492
        %502 = vst [vmem:[%s246] sm:$0xff] %v356
        %503 = vst [vmem:[%s246 + $0x8] sm:$0xff] %v357
        %s504 = sand.u32 %s117, 1
        %s505 = scalar_lea.sflag [#allocation4], %s504
        %s506 = sand.u32 %s117, 1
        %s507 = smul.addr %s506, 64
        %s508 = scalar_lea.vmem [#allocation5], %s507
        %s509 = sand.u32 %s145, 1
        %s510 = scalar_lea.sflag [#allocation7], %s509
        %s511 = sand.u32 %s145, 1
        %s512 = smul.addr %s511, 16
        %s513 = scalar_lea.vmem [#allocation6], %s512
        // Predicated region
        $region37: #{tpu_custom_call.1} parent=31 // pred_check
          %p514 = pneg %p127
        $region38: #{tpu_custom_call.1} parent=31 // pred_check_branch
          %516 = sbr.rel (%p514) target = $region40
        $region39: #{tpu_custom_call.1} parent=31 // pred_region
          %s517 = smul.u32 2, %s30
          %s519 = ssub.s32 1024, 1024
          %520 = vsyncadd %s505, %s519
          %s521 = smul.addr %s29, 8
          %s522 = sadd.s32 %s517, %s521
          %s523 = smul.addr %s522, 128
          %s524 = scalar_lea.hbm %s3, %s523
          %s525 = sshll.u32 %s508, 4
          %s526 = int_to_ptr.vmem [resolvable:$true] %s525
          %531 = dma.vmem_to_hbm [thread:$0]  %s526, 1024, %s524, %s505, 256, 256, 16
        $region40: #{tpu_custom_call.1} parent=31 // pred_fallthru
          _
        // Predicated region
        $region41: #{tpu_custom_call.1} parent=31 // pred_check
          %p532 = pneg %p155
        $region42: #{tpu_custom_call.1} parent=31 // pred_check_branch
          %534 = sbr.rel (%p532) target = $region44
        $region43: #{tpu_custom_call.1} parent=31 // pred_region
          %s535 = smul.u32 2, %s30
          %s537 = ssub.s32 256, 256
          %538 = vsyncadd %s510, %s537
          %s539 = smul.addr %s29, 2
          %s540 = sadd.s32 %s535, %s539
          %s541 = smul.addr %s540, 128
          %s542 = scalar_lea.hbm %s4, %s541
          %s544 = sshll.u32 %s513, 4
          %s545 = int_to_ptr.vmem [resolvable:$true] %s544
          %547 = dma.vmem_to_hbm [thread:$0]  %s545, 256, %s542, %s510
        $region44: #{tpu_custom_call.1} parent=31 // pred_fallthru
          _
      $region32: #{tpu_custom_call.1} parent=5 // pred_fallthru
        _
      %p548 = scmp.le.s32.totalorder 2, %s20
      // Predicated region
      $region45: #{tpu_custom_call.1} parent=5 // pred_check
        %p549 = pneg %p548
      $region46: #{tpu_custom_call.1} parent=5 // pred_check_branch
        %551 = sbr.rel (%p549) target = $region48
      $region47: #{tpu_custom_call.1} parent=5 // pred_region
        %s552 = ssub.s32 %s20, 2
        // Predicated region
        $region49: #{tpu_custom_call.1} parent=47 // pred_check
          %p553 = pneg %p133
        $region50: #{tpu_custom_call.1} parent=47 // pred_check_branch
          %555 = sbr.rel (%p553) target = $region52
        $region51: #{tpu_custom_call.1} parent=47 // pred_region
          %s556 = sand.u32 %s118, 1
          %s557 = scalar_lea.sflag [#allocation4], %s556
          %s558 = sand.u32 %s118, 1
          %s559 = smul.addr %s558, 64
          %s560 = scalar_lea.vmem [#allocation5], %s559
          %561 = dma.done %s557, 1024
        $region52: #{tpu_custom_call.1} parent=47 // pred_fallthru
          _
        // Predicated region
        $region53: #{tpu_custom_call.1} parent=47 // pred_check
          %p562 = pneg %p161
        $region54: #{tpu_custom_call.1} parent=47 // pred_check_branch
          %564 = sbr.rel (%p562) target = $region56
        $region55: #{tpu_custom_call.1} parent=47 // pred_region
          %s565 = sand.u32 %s146, 1
          %s566 = scalar_lea.sflag [#allocation7], %s565
          %s567 = sand.u32 %s146, 1
          %s568 = smul.addr %s567, 16
          %s569 = scalar_lea.vmem [#allocation6], %s568
          %570 = dma.done %s566, 256
        $region56: #{tpu_custom_call.1} parent=47 // pred_fallthru
          _
      $region48: #{tpu_custom_call.1} parent=5 // pred_fallthru
        _
    $region6: #{tpu_custom_call.1} parent=1 // loop_footer
      %s24 = sadd.s32 1, %s20
    $region7: #{tpu_custom_call.1} parent=1 // loop_footer_branch
      %19 = sbr.rel target = $region3
    $region8: #{tpu_custom_call.1} parent=1 // loop_exit
      _
    %571 = vsyncpa [#allocation3], 1
    %s572 = scalar_lea.sflag [#allocation3], 1
    %573 = vsyncpa %s572, 1
    %574 = vsyncpa [#allocation4], 1
    %s575 = scalar_lea.sflag [#allocation4], 1
    %576 = vsyncpa %s575, 1
    %577 = vsyncpa [#allocation7], 1
    %s578 = scalar_lea.sflag [#allocation7], 1
    %579 = vsyncpa %s578, 1

</llo_original>
